<compile_context>
chip_gen: v7x
topology: tpu7x:2x2x1
jax: 0.10.0
libtpu: 0.0.40
codegen_flags: <defaults>
</compile_context>

<pallas_src>
import functools
import math

import jax
import jax.numpy as jnp
from jax import lax
from jax.experimental import pallas as pl
from jax.experimental.pallas import tpu as pltpu

KSIZE = 3  # kernel_size=3, padding=1 -> "same" output spatial shape


def _round_up(x, m):
    return ((x + m - 1) // m) * m


def _dwconv_kernel(x_ref, w_ref, b_ref, o_ref, xs_ref, *, W, HWp, PAD, CHUNK):
    """Depthwise 3x3 'same' conv on a (CB, HWp) flattened tile.

    x_ref : (CB, HWp)            flattened (zero-padded) spatial plane for CB channels
    w_ref : (CB, 9)              per-channel taps, row-major over (kh, kw)
    b_ref : (CB, 1)              per-channel bias
    o_ref : (CB, HWp)
    xs_ref: (CB, PAD+HWp+PAD)    VMEM staging buffer with zeroed halos (PAD >= W+1)
    """
    CB = x_ref.shape[0]
    n_chunks = HWp // CHUNK
    pow2_w = (W & (W - 1)) == 0

    # ---- Stage the tile into the halo-padded scratch, chunk by chunk (one extra VMEM
    #      pass, a few live vregs).  The zeroed halos cover the vertical image edges.
    xs_ref[:, :PAD] = jnp.zeros((CB, PAD), xs_ref.dtype)
    xs_ref[:, PAD + HWp:] = jnp.zeros((CB, PAD), xs_ref.dtype)
    for ci in range(n_chunks):
        s0 = ci * CHUNK
        xs_ref[:, PAD + s0:PAD + s0 + CHUNK] = x_ref[:, s0:s0 + CHUNK]

    wt = w_ref[...].astype(jnp.float32)                                   # (CB, 9), read once
    bias_b = jnp.broadcast_to(b_ref[...].astype(jnp.float32), (CB, CHUNK))  # hoisted

    # ---- 9-tap accumulate, one lane chunk at a time so everything stays in vregs.
    # TODO(synk): switch to pl.loop + dynamic pl.ds lane offsets once dynamic minor-dim
    # slicing is robust everywhere; the static unroll is bounded to <= ~32 chunks.
    for ci in range(n_chunks):
        s0 = ci * CHUNK
        # Aligned window covering this chunk plus a +/-PAD (>= W+1) halo on each side.
        xw = xs_ref[:, s0:s0 + CHUNK + 2 * PAD].astype(jnp.float32)

        def tap_sum(dw, xw=xw):
            acc = None
            for dh in (-1, 0, 1):
                off = PAD + dh * W + dw               # static, always inside the window
                k = (dh + 1) * KSIZE + (dw + 1)
                t = xw[:, off:off + CHUNK] * wt[:, k:k + 1]   # per-channel lane-broadcast tap
                acc = t if acc is None else acc + t
            return acc

        # Column index of each output pixel in this chunk (horizontal wrap-around mask).
        col = s0 + lax.broadcasted_iota(jnp.int32, (CB, CHUNK), 1)
        col = (col & (W - 1)) if pow2_w else (col % W)

        out = bias_b + tap_sum(0)                             # bias folded into the init
        out = out + jnp.where(col != 0, tap_sum(-1), 0.0)     # w-1 < 0 at column 0
        out = out + jnp.where(col != W - 1, tap_sum(1), 0.0)  # w+1 >= W at last column
        o_ref[:, s0:s0 + CHUNK] = out.astype(o_ref.dtype)


def _pick_channel_block(C, N, HW128, itemsize, target_bytes=2 << 20):
    """Largest channel block CB that divides C, keeps a (CB, HW128) tile around <=2 MiB
    (v5e-safe with double-buffered in+out), is sublane-friendly for the dtype
    (8/16/32 for f32/bf16/int8), and still leaves enough grid steps for v7x's 2 TCs."""
    mult = max(8, 32 // max(1, itemsize))
    cands = sorted({C} | {d for d in range(mult, C, mult) if C % d == 0})
    fitting = [d for d in cands if d * HW128 * itemsize <= target_bytes]
    if not fitting:
        # TODO(synk): add an H-tiled path (row-block grid axis + 1-row halo) for spatial
        # planes so large that even the smallest channel block exceeds the VMEM budget.
        return cands[0]
    i = len(fitting) - 1
    # Prefer >= ~8 grid steps (~4 per v7x TensorCore) while tiles stay >= 512 KiB.
    while (N * (C // fitting[i]) < 8 and i > 0
           and fitting[i - 1] * HW128 * itemsize >= (512 << 10)):
        i -= 1
    return fitting[i]


def _pick_chunk(CB, HW):
    """Lane-chunk size: multiple of 128, ~32 KiB of f32 per chunk-sized array (keeps the
    9-tap pipeline + masks + accumulator inside the 64-vreg file), grown only as needed
    to keep the unrolled chunk loop at <= 32 iterations."""
    soft = max(128, ((32 << 10) // (CB * 4)) // 128 * 128)
    hard = max(soft, ((128 << 10) // (CB * 4)) // 128 * 128)
    chunk = max(128, min(soft, 2048, _round_up(HW, 128)))
    while _round_up(HW, chunk) // chunk > 32 and chunk < hard:
        chunk += 128
    return chunk


def depthwise_conv2d(x, weight, bias):
    """x: (N, C, H, W); weight: (C, 1, 3, 3); bias: (C,). Returns (N, C, H, W).

    Matches nn.Conv2d(C, C, kernel_size=3, padding=1, groups=C).
    """
    N, C, H, W = x.shape
    HW = H * W
    itemsize = jnp.dtype(x.dtype).itemsize

    CB = _pick_channel_block(C, N, _round_up(HW, 128), itemsize)
    CHUNK = _pick_chunk(CB, HW)
    HWp = _round_up(HW, CHUNK)          # lane-dense (multiple of 128) and chunk-aligned
    PAD = _round_up(W + 1, 128)         # one-row halo on each side of the staging scratch

    # Free, contiguous reshape; zero-pad the flattened spatial axis only when needed so
    # every store is a full, unmasked lane-dense vst (the tail is sliced off at the end).
    x_flat = x.reshape(N, C, HW)
    if HWp != HW:
        x_flat = jnp.pad(x_flat, ((0, 0), (0, 0), (0, HWp - HW)))
    w_flat = weight.reshape(C, KSIZE * KSIZE)
    b_flat = bias.reshape(C, 1)

    grid = (C // CB, N)                 # batch is the fast axis -> weight/bias blocks keep
                                        # the same index and are not re-DMA'd per step.

    in_tile = CB * HWp * itemsize
    scratch_bytes = CB * (HWp + 2 * PAD) * itemsize
    vmem_needed = 4 * in_tile + scratch_bytes + (1 << 20)   # 2x(in+out) double buffers
    vmem_limit = int(min(max(2 * vmem_needed, 24 << 20), 48 << 20))

    flops = 2 * KSIZE * KSIZE * N * C * HW
    bytes_accessed = int(2 * N * C * HWp * itemsize
                         + (C // CB) * (w_flat.size + b_flat.size)
                         * jnp.dtype(weight.dtype).itemsize)

    out_flat = pl.pallas_call(
        functools.partial(_dwconv_kernel, W=W, HWp=HWp, PAD=PAD, CHUNK=CHUNK),
        out_shape=jax.ShapeDtypeStruct((N, C, HWp), x.dtype),
        grid=grid,
        in_specs=[
            pl.BlockSpec((None, CB, HWp), lambda c, n: (n, c, 0)),
            pl.BlockSpec((CB, KSIZE * KSIZE), lambda c, n: (c, 0)),
            pl.BlockSpec((CB, 1), lambda c, n: (c, 0)),
        ],
        out_specs=pl.BlockSpec((None, CB, HWp), lambda c, n: (n, c, 0)),
        scratch_shapes=[pltpu.VMEM((CB, HWp + 2 * PAD), x.dtype)],
        compiler_params=pltpu.CompilerParams(
            dimension_semantics=("parallel", "parallel"),
            vmem_limit_bytes=vmem_limit,
        ),
        cost_estimate=pl.CostEstimate(
            flops=flops, transcendentals=0, bytes_accessed=bytes_accessed),
    )(x_flat, w_flat, b_flat)

    if HWp != HW:
        out_flat = out_flat[:, :, :HW]
    return out_flat.reshape(N, C, H, W)


if __name__ == "__main__":
    key = jax.random.PRNGKey(0)
    kx, kw, kb = jax.random.split(key, 3)

    N, C, H, W = 2, 4, 16, 16
    x = jax.random.normal(kx, (N, C, H, W), dtype=jnp.float32)

    # Deterministic synthetic parameters (nn.Conv2d(C, C, 3, padding=1, groups=C) init):
    fan_in = 1 * KSIZE * KSIZE
    bound = 1.0 / math.sqrt(fan_in)
    weight = jax.random.uniform(kw, (C, 1, KSIZE, KSIZE), jnp.float32, -bound, bound)
    bias = jax.random.uniform(kb, (C,), jnp.float32, -bound, bound)

    out = jax.block_until_ready(depthwise_conv2d(x, weight, bias))

    # Reference: XLA grouped conv (same semantics as PyTorch depthwise conv).
    ref = lax.conv_general_dilated(
        x, weight, window_strides=(1, 1), padding="SAME",
        dimension_numbers=("NCHW", "OIHW", "NCHW"),
        feature_group_count=C,
    ) + bias[None, :, None, None]
    ref = jax.block_until_ready(ref)

    assert out.shape == (N, C, H, W)
    max_err = float(jnp.max(jnp.abs(out - ref)))
    assert jnp.allclose(out, ref, atol=1e-5, rtol=1e-5), max_err
    print("KERNEL_OK")
</pallas_src>

<mosaic_0001>
module attributes {stable_mosaic.version = 11 : i64} {
  func.func @_dwconv_kernel(%arg0: i32, %arg1: i32, %arg2: memref<1x4x256xf32, #tpu.memory_space<vmem>>, %arg3: memref<4x9xf32, #tpu.memory_space<vmem>>, %arg4: memref<4x1xf32, #tpu.memory_space<vmem>>, %arg5: memref<1x4x256xf32, #tpu.memory_space<vmem>>, %arg6: memref<4x512xf32, #tpu.memory_space<vmem>>) attributes {dimension_semantics = [#tpu.dimension_semantics<parallel>, #tpu.dimension_semantics<parallel>], iteration_bounds = array<i64: 1, 2>, scalar_prefetch = 0 : i64, scratch_operands = 1 : i64, tpu.core_type = #tpu.core_type<tc>, window_params = [{transform_indices = @transform_0, window_bounds = array<i64: 1, 4, 256>}, {transform_indices = @transform_1, window_bounds = array<i64: 4, 9>}, {transform_indices = @transform_2, window_bounds = array<i64: 4, 1>}, {transform_indices = @transform_3, window_bounds = array<i64: 1, 4, 256>}]} {
    %cst = arith.constant 0.000000e+00 : f32
    %0 = vector.broadcast %cst : f32 to vector<4x128xf32>
    %c0 = arith.constant 0 : index
    %c0_0 = arith.constant 0 : index
    %1 = vector.load %arg6[%c0, %c0_0] : memref<4x512xf32, #tpu.memory_space<vmem>>, vector<4x128xf32>
    tpu.vector_store %arg6[%c0, %c0_0], %0 {strides = array<i32>} : memref<4x512xf32, #tpu.memory_space<vmem>>, vector<4x128xf32>,
    %cst_1 = arith.constant 0.000000e+00 : f32
    %2 = vector.broadcast %cst_1 : f32 to vector<4x128xf32>
    %c0_2 = arith.constant 0 : index
    %c384 = arith.constant 384 : index
    %3 = vector.load %arg6[%c0_2, %c384] : memref<4x512xf32, #tpu.memory_space<vmem>>, vector<4x128xf32>
    tpu.vector_store %arg6[%c0_2, %c384], %2 {strides = array<i32>} : memref<4x512xf32, #tpu.memory_space<vmem>>, vector<4x128xf32>,
    %c0_3 = arith.constant 0 : index
    %c0_4 = arith.constant 0 : index
    %c0_5 = arith.constant 0 : index
    %4 = vector.load %arg2[%c0_3, %c0_4, %c0_5] : memref<1x4x256xf32, #tpu.memory_space<vmem>>, vector<1x4x256xf32>
    %5 = vector.shape_cast %4 : vector<1x4x256xf32> to vector<4x256xf32>
    %c0_6 = arith.constant 0 : index
    %c128 = arith.constant 128 : index
    %6 = vector.load %arg6[%c0_6, %c128] : memref<4x512xf32, #tpu.memory_space<vmem>>, vector<4x256xf32>
    tpu.vector_store %arg6[%c0_6, %c128], %5 {strides = array<i32>} : memref<4x512xf32, #tpu.memory_space<vmem>>, vector<4x256xf32>,
    %c0_7 = arith.constant 0 : index
    %c0_8 = arith.constant 0 : index
    %7 = vector.load %arg3[%c0_7, %c0_8] : memref<4x9xf32, #tpu.memory_space<vmem>>, vector<4x9xf32>
    %c0_9 = arith.constant 0 : index
    %c0_10 = arith.constant 0 : index
    %8 = vector.load %arg4[%c0_9, %c0_10] : memref<4x1xf32, #tpu.memory_space<vmem>>, vector<4x1xf32>
    %9 = vector.shape_cast %8 : vector<4x1xf32> to vector<4x1xf32>
    %10 = vector.broadcast %9 : vector<4x1xf32> to vector<4x256xf32>
    %c0_11 = arith.constant 0 : index
    %c0_12 = arith.constant 0 : index
    %11 = vector.load %arg6[%c0_11, %c0_12] : memref<4x512xf32, #tpu.memory_space<vmem>>, vector<4x512xf32>
    %12 = tpu.iota {dimensions = array<i32: 1>} : vector<4x256xi32>
    %c0_i32 = arith.constant 0 : i32
    %13 = vector.broadcast %c0_i32 : i32 to vector<4x256xi32>
    %14 = arith.addi %13, %12 : vector<4x256xi32>
    %c15_i32 = arith.constant 15 : i32
    %15 = vector.broadcast %c15_i32 : i32 to vector<4x256xi32>
    %16 = arith.andi %14, %15 : vector<4x256xi32>
    %17 = vector.extract_strided_slice %11 {offsets = [0, 112], sizes = [4, 256], strides = [1, 1]} : vector<4x512xf32> to vector<4x256xf32>
    %18 = vector.extract_strided_slice %7 {offsets = [0, 1], sizes = [4, 1], strides = [1, 1]} : vector<4x9xf32> to vector<4x1xf32>
    %19 = vector.broadcast %18 : vector<4x1xf32> to vector<4x256xf32>
    %20 = arith.mulf %17, %19 : vector<4x256xf32>
    %21 = vector.extract_strided_slice %11 {offsets = [0, 128], sizes = [4, 256], strides = [1, 1]} : vector<4x512xf32> to vector<4x256xf32>
    %22 = vector.extract_strided_slice %7 {offsets = [0, 4], sizes = [4, 1], strides = [1, 1]} : vector<4x9xf32> to vector<4x1xf32>
    %23 = vector.broadcast %22 : vector<4x1xf32> to vector<4x256xf32>
    %24 = arith.mulf %21, %23 : vector<4x256xf32>
    %25 = arith.addf %20, %24 : vector<4x256xf32>
    %26 = vector.extract_strided_slice %11 {offsets = [0, 144], sizes = [4, 256], strides = [1, 1]} : vector<4x512xf32> to vector<4x256xf32>
    %27 = vector.extract_strided_slice %7 {offsets = [0, 7], sizes = [4, 1], strides = [1, 1]} : vector<4x9xf32> to vector<4x1xf32>
    %28 = vector.broadcast %27 : vector<4x1xf32> to vector<4x256xf32>
    %29 = arith.mulf %26, %28 : vector<4x256xf32>
    %30 = arith.addf %25, %29 : vector<4x256xf32>
    %31 = arith.addf %10, %30 : vector<4x256xf32>
    %c0_i32_13 = arith.constant 0 : i32
    %32 = vector.broadcast %c0_i32_13 : i32 to vector<4x256xi32>
    %33 = arith.cmpi ne, %16, %32 : vector<4x256xi32>
    %34 = vector.extract_strided_slice %11 {offsets = [0, 111], sizes = [4, 256], strides = [1, 1]} : vector<4x512xf32> to vector<4x256xf32>
    %35 = vector.extract_strided_slice %7 {offsets = [0, 0], sizes = [4, 1], strides = [1, 1]} : vector<4x9xf32> to vector<4x1xf32>
    %36 = vector.broadcast %35 : vector<4x1xf32> to vector<4x256xf32>
    %37 = arith.mulf %34, %36 : vector<4x256xf32>
    %38 = vector.extract_strided_slice %11 {offsets = [0, 127], sizes = [4, 256], strides = [1, 1]} : vector<4x512xf32> to vector<4x256xf32>
    %39 = vector.extract_strided_slice %7 {offsets = [0, 3], sizes = [4, 1], strides = [1, 1]} : vector<4x9xf32> to vector<4x1xf32>
    %40 = vector.broadcast %39 : vector<4x1xf32> to vector<4x256xf32>
    %41 = arith.mulf %38, %40 : vector<4x256xf32>
    %42 = arith.addf %37, %41 : vector<4x256xf32>
    %43 = vector.extract_strided_slice %11 {offsets = [0, 143], sizes = [4, 256], strides = [1, 1]} : vector<4x512xf32> to vector<4x256xf32>
    %44 = vector.extract_strided_slice %7 {offsets = [0, 6], sizes = [4, 1], strides = [1, 1]} : vector<4x9xf32> to vector<4x1xf32>
    %45 = vector.broadcast %44 : vector<4x1xf32> to vector<4x256xf32>
    %46 = arith.mulf %43, %45 : vector<4x256xf32>
    %47 = arith.addf %42, %46 : vector<4x256xf32>
    %cst_14 = arith.constant 0.000000e+00 : f32
    %48 = vector.broadcast %cst_14 : f32 to vector<4x256xf32>
    %49 = arith.select %33, %47, %48 : vector<4x256xi1>, vector<4x256xf32>
    %50 = arith.addf %31, %49 : vector<4x256xf32>
    %c15_i32_15 = arith.constant 15 : i32
    %51 = vector.broadcast %c15_i32_15 : i32 to vector<4x256xi32>
    %52 = arith.cmpi ne, %16, %51 : vector<4x256xi32>
    %53 = vector.extract_strided_slice %11 {offsets = [0, 113], sizes = [4, 256], strides = [1, 1]} : vector<4x512xf32> to vector<4x256xf32>
    %54 = vector.extract_strided_slice %7 {offsets = [0, 2], sizes = [4, 1], strides = [1, 1]} : vector<4x9xf32> to vector<4x1xf32>
    %55 = vector.broadcast %54 : vector<4x1xf32> to vector<4x256xf32>
    %56 = arith.mulf %53, %55 : vector<4x256xf32>
    %57 = vector.extract_strided_slice %11 {offsets = [0, 129], sizes = [4, 256], strides = [1, 1]} : vector<4x512xf32> to vector<4x256xf32>
    %58 = vector.extract_strided_slice %7 {offsets = [0, 5], sizes = [4, 1], strides = [1, 1]} : vector<4x9xf32> to vector<4x1xf32>
    %59 = vector.broadcast %58 : vector<4x1xf32> to vector<4x256xf32>
    %60 = arith.mulf %57, %59 : vector<4x256xf32>
    %61 = arith.addf %56, %60 : vector<4x256xf32>
    %62 = vector.extract_strided_slice %11 {offsets = [0, 145], sizes = [4, 256], strides = [1, 1]} : vector<4x512xf32> to vector<4x256xf32>
    %63 = vector.extract_strided_slice %7 {offsets = [0, 8], sizes = [4, 1], strides = [1, 1]} : vector<4x9xf32> to vector<4x1xf32>
    %64 = vector.broadcast %63 : vector<4x1xf32> to vector<4x256xf32>
    %65 = arith.mulf %62, %64 : vector<4x256xf32>
    %66 = arith.addf %61, %65 : vector<4x256xf32>
    %cst_16 = arith.constant 0.000000e+00 : f32
    %67 = vector.broadcast %cst_16 : f32 to vector<4x256xf32>
    %68 = arith.select %52, %66, %67 : vector<4x256xi1>, vector<4x256xf32>
    %69 = arith.addf %50, %68 : vector<4x256xf32>
    %c0_17 = arith.constant 0 : index
    %c0_18 = arith.constant 0 : index
    %c0_19 = arith.constant 0 : index
    %70 = vector.load %arg5[%c0_17, %c0_18, %c0_19] : memref<1x4x256xf32, #tpu.memory_space<vmem>>, vector<1x4x256xf32>
    %71 = vector.shape_cast %70 : vector<1x4x256xf32> to vector<4x256xf32>
    %72 = vector.shape_cast %69 : vector<4x256xf32> to vector<1x4x256xf32>
    tpu.vector_store %arg5[%c0_17, %c0_18, %c0_19], %72 {strides = array<i32>} : memref<1x4x256xf32, #tpu.memory_space<vmem>>, vector<1x4x256xf32>,
    return
  }
  func.func @transform_0(%arg0: i32, %arg1: i32) -> (i32, i32, i32) {
    %c0_i32 = arith.constant 0 : i32
    %c0_i32_0 = arith.constant 0 : i32
    return %arg1, %arg0, %c0_i32 : i32, i32, i32
  }
  func.func @transform_1(%arg0: i32, %arg1: i32) -> (i32, i32) {
    %c0_i32 = arith.constant 0 : i32
    %c0_i32_0 = arith.constant 0 : i32
    return %arg0, %c0_i32 : i32, i32
  }
  func.func @transform_2(%arg0: i32, %arg1: i32) -> (i32, i32) {
    %c0_i32 = arith.constant 0 : i32
    %c0_i32_0 = arith.constant 0 : i32
    return %arg0, %c0_i32 : i32, i32
  }
  func.func @transform_3(%arg0: i32, %arg1: i32) -> (i32, i32, i32) {
    %c0_i32 = arith.constant 0 : i32
    %c0_i32_0 = arith.constant 0 : i32
    return %arg1, %arg0, %c0_i32 : i32, i32, i32
  }
}

</mosaic_0001>

<llo_original>
// kernel: tpu_custom_call.1
$region0: #{tpu_custom_call.1}
  #allocation0 [shape = 'u32[]', space=smem, size = 0x4, offset = 0x4, fixed_abs, tag = 'smem constant byte address 0x4 - core index']
  #allocation1 [shape = 'u32[144,128]{1,0:T(1,128)}', space=vmem, size = 0x12000, scoped, tag = 'internal scratch']
  #allocation2 [shape = 'f32[4,512]{1,0:T(4,128)}', space=vmem, size = 0x2000, scoped, tag = 'scratch operand']
  %s0 = inlined_call_operand.hbm [shape: f32[2,4,256], index: 0, kind: input, shape index: {}]
  %s1 = inlined_call_operand.vmem [shape: f32[4,9], index: 1, kind: input, shape index: {}]
  %s2 = inlined_call_operand.vmem [shape: f32[4,1], index: 2, kind: input, shape index: {}]
  %s3 = inlined_call_operand.hbm [shape: f32[2,4,256], index: 3, kind: output, shape index: {}]
  %s4 = sld [smem:[#allocation0]]
  $region49: #{tpu_custom_call.1} parent=0
    _
  %s6 = ssub.s32 1, %s4
  %s7 = scalar_select 0, %s6, %s4
  $region1: #{tpu_custom_call.1} parent=0
    #allocation3 [shape = 'u8[8192]{0}', space=vmem, size = 0x2000, scoped, tag = 'input window, operand 0']
    #allocation4 [shape = 's32[2]{0}', space=sflag, size = 0x8, scoped, tag = 'scoped memory for tpu_custom_call.1']
    #allocation5 [shape = 's32[2]{0}', space=sflag, size = 0x8, scoped, tag = 'scoped memory for tpu_custom_call.1']
    #allocation6 [shape = 'u8[8192]{0}', space=vmem, size = 0x2000, scoped, tag = 'output window, operand 0']
    %8 = vsyncpa [#allocation4], 0
    %s9 = scalar_lea.sflag [#allocation4], 1
    %10 = vsyncpa %s9, 0
    %11 = vsyncpa [#allocation5], 0
    %s12 = scalar_lea.sflag [#allocation5], 1
    %13 = vsyncpa %s12, 0
    loop: start=0, step=1, limit=4
    $region2: #{tpu_custom_call.1} parent=1 // loop_pre_header
      _
    $region3: #{tpu_custom_call.1} parent=1 // loop_header
      %s15 = sphi 0, %s19
      %p16 = scmp.ge.s32.totalorder %s15, 4
      %s22 = sphi 0, %s34
      %s23 = sphi 0, %s30
      %s24 = sphi 0, %s22
      %s25 = sphi 0, %s23
      %s26 = sphi 0, %s24
      %s27 = sphi 0, %s25
      %s39 = sphi 0, %s41
      %s42 = sphi 0, %s39
      %s43 = sphi 0, %s42
      %s59 = sphi 0, %s43
      %s65 = sphi 0, %s67
      %s68 = sphi 0, %s65
      %s69 = sphi 0, %s68
      %s85 = sphi 0, %s69
      %s91 = sphi 0, %s93
      %s94 = sphi 0, %s91
      %s95 = sphi 0, %s94
      %s111 = sphi 0, %s95
      %s119 = sphi 0, %s121
      %s122 = sphi 0, %s119
      %s123 = sphi 0, %s122
      %s139 = sphi 0, %s123
    $region4: #{tpu_custom_call.1} parent=1 // loop_header_branch
      %18 = sbr.rel (%p16) target = $region8
    $region5: #{tpu_custom_call.1} parent=1 // loop_body
      %s20 = ssub.s32 %s15, 1
      %s21 = ssub.s32 %s15, 2
      %s28 = sadd.s32 1, %s23
      %p29 = scmp.ge.s32.totalorder %s28, 2
      %s30 = scalar_select %p29, 0, %s28
      %s31 = sadd.s32 1, %s22
      %s32 = scalar_select %p29, %s31, %s22
      %p33 = scmp.ge.s32.totalorder %s32, 1
      %s34 = scalar_select %p33, 0, %s32
      %s35 = ssub.s32 %s23, %s30
      %s36 = ssub.s32 %s22, %s34
      %s37 = sor.u32 %s35, %s36
      %p38 = scmp.eq.s32.totalorder %s37, 0
      %s40 = sadd.s32 %s39, 1
      %s41 = scalar_select %p38, %s39, %s40
      %p44 = pneg %p38
      %p45 = scmp.eq.s32.totalorder %s15, 1
      %p46 = por %p44, %p45
      %p47 = scmp.ne.s32.totalorder %s39, %s42
      %p48 = scmp.eq.s32.totalorder %s15, 0
      %p49 = por %p47, %p48
      %p50 = scmp.ne.s32.totalorder %s39, %s42
      %p51 = scmp.eq.s32.totalorder %s20, 1
      %p52 = por %p50, %p51
      %p53 = scmp.ne.s32.totalorder %s42, %s43
      %p54 = scmp.eq.s32.totalorder %s20, 0
      %p55 = por %p53, %p54
      %p56 = scmp.ne.s32.totalorder %s42, %s43
      %p57 = scmp.eq.s32.totalorder %s21, 1
      %p58 = por %p56, %p57
      %p60 = scmp.ne.s32.totalorder %s43, %s59
      %p61 = scmp.eq.s32.totalorder %s21, 0
      %p62 = por %p60, %p61
      %s63 = ssub.s32 %s22, %s34
      %p64 = scmp.eq.s32.totalorder %s63, 0
      %s66 = sadd.s32 %s65, 1
      %s67 = scalar_select %p64, %s65, %s66
      %p70 = pneg %p64
      %p71 = scmp.eq.s32.totalorder %s15, 1
      %p72 = por %p70, %p71
      %p73 = scmp.ne.s32.totalorder %s65, %s68
      %p74 = scmp.eq.s32.totalorder %s15, 0
      %p75 = por %p73, %p74
      %p76 = scmp.ne.s32.totalorder %s65, %s68
      %p77 = scmp.eq.s32.totalorder %s20, 1
      %p78 = por %p76, %p77
      %p79 = scmp.ne.s32.totalorder %s68, %s69
      %p80 = scmp.eq.s32.totalorder %s20, 0
      %p81 = por %p79, %p80
      %p82 = scmp.ne.s32.totalorder %s68, %s69
      %p83 = scmp.eq.s32.totalorder %s21, 1
      %p84 = por %p82, %p83
      %p86 = scmp.ne.s32.totalorder %s69, %s85
      %p87 = scmp.eq.s32.totalorder %s21, 0
      %p88 = por %p86, %p87
      %s89 = ssub.s32 %s22, %s34
      %p90 = scmp.eq.s32.totalorder %s89, 0
      %s92 = sadd.s32 %s91, 1
      %s93 = scalar_select %p90, %s91, %s92
      %p96 = pneg %p90
      %p97 = scmp.eq.s32.totalorder %s15, 1
      %p98 = por %p96, %p97
      %p99 = scmp.ne.s32.totalorder %s91, %s94
      %p100 = scmp.eq.s32.totalorder %s15, 0
      %p101 = por %p99, %p100
      %p102 = scmp.ne.s32.totalorder %s91, %s94
      %p103 = scmp.eq.s32.totalorder %s20, 1
      %p104 = por %p102, %p103
      %p105 = scmp.ne.s32.totalorder %s94, %s95
      %p106 = scmp.eq.s32.totalorder %s20, 0
      %p107 = por %p105, %p106
      %p108 = scmp.ne.s32.totalorder %s94, %s95
      %p109 = scmp.eq.s32.totalorder %s21, 1
      %p110 = por %p108, %p109
      %p112 = scmp.ne.s32.totalorder %s95, %s111
      %p113 = scmp.eq.s32.totalorder %s21, 0
      %p114 = por %p112, %p113
      %s115 = ssub.s32 %s23, %s30
      %s116 = ssub.s32 %s22, %s34
      %s117 = sor.u32 %s115, %s116
      %p118 = scmp.eq.s32.totalorder %s117, 0
      %s120 = sadd.s32 %s119, 1
      %s121 = scalar_select %p118, %s119, %s120
      %p124 = pneg %p118
      %p125 = scmp.eq.s32.totalorder %s15, 1
      %p126 = por %p124, %p125
      %p127 = scmp.ne.s32.totalorder %s119, %s122
      %p128 = scmp.eq.s32.totalorder %s15, 0
      %p129 = por %p127, %p128
      %p130 = scmp.ne.s32.totalorder %s119, %s122
      %p131 = scmp.eq.s32.totalorder %s20, 1
      %p132 = por %p130, %p131
      %p133 = scmp.ne.s32.totalorder %s122, %s123
      %p134 = scmp.eq.s32.totalorder %s20, 0
      %p135 = por %p133, %p134
      %p136 = scmp.ne.s32.totalorder %s122, %s123
      %p137 = scmp.eq.s32.totalorder %s21, 1
      %p138 = por %p136, %p137
      %p140 = scmp.ne.s32.totalorder %s123, %s139
      %p141 = scmp.eq.s32.totalorder %s21, 0
      %p142 = por %p140, %p141
      %p143 = scmp.le.s32.totalorder 1, %s15
      %p144 = scmp.lt.s32.totalorder %s15, 3
      %p145 = pnand %p143, %p144
      %p146 = pneg %p145
      // Predicated region
      $region9: #{tpu_custom_call.1} parent=5 // pred_check
        _
      $region10: #{tpu_custom_call.1} parent=5 // pred_check_branch
        %148 = sbr.rel (%p145) target = $region12
      $region11: #{tpu_custom_call.1} parent=5 // pred_region
        %s149 = ssub.s32 %s15, 1
        // Predicated region
        $region13: #{tpu_custom_call.1} parent=11 // pred_check
          %p150 = pneg %p81
        $region14: #{tpu_custom_call.1} parent=11 // pred_check_branch
          %152 = sbr.rel (%p150) target = $region16
        $region15: #{tpu_custom_call.1} parent=11 // pred_region
          %p153 = scmp.lt.s32.totalorder %s24, 0
          %s154 = scalar_select %p153, %s24, 0
          %s155 = smul.addr %s154, 4
          %s156 = scalar_lea.vmem %s1, %s155
        $region16: #{tpu_custom_call.1} parent=11 // pred_fallthru
          _
        // Predicated region
        $region17: #{tpu_custom_call.1} parent=11 // pred_check
          %p157 = pneg %p107
        $region18: #{tpu_custom_call.1} parent=11 // pred_check_branch
          %159 = sbr.rel (%p157) target = $region20
        $region19: #{tpu_custom_call.1} parent=11 // pred_region
          %p160 = scmp.lt.s32.totalorder %s24, 0
          %s161 = scalar_select %p160, %s24, 0
          %s162 = smul.addr %s161, 4
          %s163 = scalar_lea.vmem %s2, %s162
        $region20: #{tpu_custom_call.1} parent=11 // pred_fallthru
          _
      $region12: #{tpu_custom_call.1} parent=5 // pred_fallthru
        _
      %p164 = scmp.lt.s32.totalorder %s15, 2
      // Predicated region
      $region21: #{tpu_custom_call.1} parent=5 // pred_check
        %p165 = pneg %p164
      $region22: #{tpu_custom_call.1} parent=5 // pred_check_branch
        %167 = sbr.rel (%p165) target = $region24
      $region23: #{tpu_custom_call.1} parent=5 // pred_region
        // Predicated region
        $region25: #{tpu_custom_call.1} parent=23 // pred_check
          %p168 = pneg %p49
        $region26: #{tpu_custom_call.1} parent=23 // pred_check_branch
          %170 = sbr.rel (%p168) target = $region28
        $region27: #{tpu_custom_call.1} parent=23 // pred_region
          %s171 = sand.u32 %s39, 1
          %s172 = scalar_lea.sflag [#allocation4], %s171
          %s173 = sand.u32 %s39, 1
          %s174 = smul.addr %s173, 8
          %s175 = scalar_lea.vmem [#allocation3], %s174
          %s177 = ssub.s32 128, 128
          %178 = vsyncadd %s172, %s177
          %s179 = smul.addr %s22, 2
          %s180 = smul.addr %s23, 2
          %s181 = sadd.s32 %s179, %s180
          %s182 = smul.addr %s181, 64
          %s183 = scalar_lea.hbm %s0, %s182
          %s185 = sshll.u32 %s175, 4
          %s186 = int_to_ptr.vmem [resolvable:$true] %s185
          %188 = dma.hbm_to_vmem [thread:$0]  %s183, 128, %s186, %s172
        $region28: #{tpu_custom_call.1} parent=23 // pred_fallthru
          _
      $region24: #{tpu_custom_call.1} parent=5 // pred_fallthru
        _
      %p189 = scmp.le.s32.totalorder 1, %s15
      %p190 = scmp.lt.s32.totalorder %s15, 3
      %p191 = pnand %p189, %p190
      %p192 = pneg %p191
      // Predicated region
      $region29: #{tpu_custom_call.1} parent=5 // pred_check
        _
      $region30: #{tpu_custom_call.1} parent=5 // pred_check_branch
        %194 = sbr.rel (%p191) target = $region32
      $region31: #{tpu_custom_call.1} parent=5 // pred_region
        %s195 = ssub.s32 %s15, 1
        %s196 = sand.u32 %s42, 1
        %s197 = scalar_lea.sflag [#allocation4], %s196
        %s198 = sand.u32 %s42, 1
        %s199 = smul.addr %s198, 8
        %s200 = scalar_lea.vmem [#allocation3], %s199
        // Predicated region
        $region33: #{tpu_custom_call.1} parent=31 // pred_check
          %p201 = pneg %p55
        $region34: #{tpu_custom_call.1} parent=31 // pred_check_branch
          %203 = sbr.rel (%p201) target = $region36
        $region35: #{tpu_custom_call.1} parent=31 // pred_region
          %204 = dma.done %s197, 128
        $region36: #{tpu_custom_call.1} parent=31 // pred_fallthru
          _
        %s205 = sand.u32 %s42, 1
        %s206 = scalar_lea.sflag [#allocation4], %s205
        %s207 = sand.u32 %s42, 1
        %s208 = smul.addr %s207, 8
        %s209 = scalar_lea.vmem [#allocation3], %s208
        %p210 = pneg %p55
        %p211 = pneg %p52
        %p212 = scmp.lt.s32.totalorder %s24, 0
        %s213 = scalar_select %p212, %s24, 0
        %s214 = smul.addr %s213, 4
        %s215 = scalar_lea.vmem %s1, %s214
        %p216 = pneg %p81
        %p217 = pneg %p78
        %p218 = scmp.lt.s32.totalorder %s24, 0
        %s219 = scalar_select %p218, %s24, 0
        %s220 = smul.addr %s219, 4
        %s221 = scalar_lea.vmem %s2, %s220
        %p222 = pneg %p107
        %p223 = pneg %p104
        %p224 = pneg %p135
        %p225 = pneg %p132
        %s226 = sand.u32 %s122, 1
        %s227 = scalar_lea.sflag [#allocation5], %s226
        %s228 = sand.u32 %s122, 1
        %s229 = smul.addr %s228, 8
        %s230 = scalar_lea.vmem [#allocation6], %s229
        %p231 = scmp.lt.s32.totalorder %s24, 0
        %s232 = scalar_select %p231, %s24, 0
        %s233 = smul.addr %s232, 4
        %s234 = scalar_lea.vmem %s1, %s233
        %p235 = scmp.lt.s32.totalorder %s24, 0
        %s236 = scalar_select %p235, %s24, 0
        %s237 = smul.addr %s236, 4
        %s238 = scalar_lea.vmem %s2, %s237
        %239 = vst [vmem:[#allocation2] sm:$0xf] 0.0
        %240 = vst [vmem:[#allocation2 + $0xc] sm:$0xf] 0.0
        %v241 = vld [vmem:[%s200] sm:$0xff]
        %242 = vst [vmem:[#allocation2 + $0x4] sm:$0xff] %v241
        %v243 = vld [vmem:[%s234] sm:$0xf]
        %v244 = vld [vmem:[%s238] sm:$0xf]
        %246 = vset.pattern.permute.xlu0 0
        %247 = vperm.xlu0 %246, %v244
        %v248 = vpop.permute.xlu0 %247
        %v250 = vld [vmem:[#allocation2] sm:$0xff]
        %v251 = vld [vmem:[#allocation2 + $0x8] sm:$0xff]
        %v252 = vlaneseq
        %v253 = vand.u32 %v252, 127
        %v254 = vadd.s32 %v253, 128
        %v255 = vand.u32 %v253, 15
        %v256 = vand.u32 %v254, 15
        %258 = vset.pattern.permute.xlu0 1
        %259 = vperm.xlu0 %258, %v243
        %v260 = vpop.permute.xlu0 %259
        %v262 = vunpack.c.l.s4 839922192
        %v263 = vunpack.c.0.s8 %v262
        %v264 = vlaneseq
        %v265 = vshrl.u32 %v264, 7
        %v266 = vsub.s32 %v263, %v265
        %v267 = vrot.slane %v260, %v266
        %v269 = vmul.f32 %v250, %v267
        %v270 = vmul.f32 %v251, %v267
        %271 = vset.pattern.permute.xlu0 4
        %272 = vperm.xlu0 %271, %v243
        %v273 = vpop.permute.xlu0 %272
        %v276 = vrot.slane %v250, 4
        %v277 = vrot.slane %v251, 4
        %vm278 = vcmask 1043456
        %v279 = vsel %vm278, %v276, %v277
        %v282 = vunpack.c.l.s4 839922192
        %v283 = vunpack.c.0.s8 %v282
        %v284 = vlaneseq
        %v285 = vshrl.u32 %v284, 7
        %v286 = vsub.s32 %v283, %v285
        %v287 = vrot.slane %v273, %v286
        %v289 = vmul.f32 %v279, %v287
        %291 = vrot.lane.b32.xlu0 %v289, 112
        %v292 = vpop.permute.xlu0 %291
        %v293 = vrot.slane %v292, 4
        %vm294 = vcmask 916480
        %v295 = vsel %vm294, %v293, %v292
        %v298 = vadd.f32 %v269, %v295
        %v299 = vadd.f32 %v270, %v293
        %300 = vset.pattern.permute.xlu0 7
        %301 = vperm.xlu0 %300, %v243
        %v302 = vpop.permute.xlu0 %301
        %303 = vrot.lane.b32.xlu0 %v250, 112
        %v304 = vpop.permute.xlu0 %303
        %305 = vrot.lane.b32.xlu0 %v251, 112
        %v306 = vpop.permute.xlu0 %305
        %v307 = vrot.slane %v304, 4
        %v308 = vrot.slane %v306, 4
        %v309 = vsel %vm278, %v307, %v308
        %v310 = vsel %vm294, %v309, %v306
        %v313 = vunpack.c.l.s4 839922192
        %v314 = vunpack.c.0.s8 %v313
        %v315 = vlaneseq
        %v316 = vshrl.u32 %v315, 7
        %v317 = vsub.s32 %v314, %v316
        %v318 = vrot.slane %v302, %v317
        %v320 = vmul.f32 %v310, %v318
        %322 = vrot.lane.b32.xlu0 %v320, 112
        %v323 = vpop.permute.xlu0 %322
        %v324 = vrot.slane %v323, 4
        %v325 = vsel %vm294, %v324, %v323
        %v328 = vadd.f32 %v298, %v325
        %v329 = vadd.f32 %v299, %v324
        %v332 = vcombine.high %v328, %v328
        %333 = vrot.lane.b32.xlu0 %v328, 16
        %v334 = vpop.permute.xlu0 %333
        %335 = vrot.lane.b32.xlu0 %v332, 16
        %v336 = vpop.permute.xlu0 %335
        %337 = vrot.lane.b32.xlu0 %v329, 16
        %v338 = vpop.permute.xlu0 %337
        %vm339 = vcmask 130048
        %v340 = vsel %vm339, %v334, %v336
        %v341 = vsel %vm339, %v336, %v338
        %v344 = vadd.f32 %v248, %v340
        %v345 = vadd.f32 %v248, %v341
        %vm346 = vcmp.ne.s32.totalorder %v255, 0
        %vm347 = vcmp.ne.s32.totalorder %v256, 0
        %348 = vset.pattern.permute.xlu0 0
        %349 = vperm.xlu0 %348, %v243
        %v350 = vpop.permute.xlu0 %349
        %v352 = vunpack.c.l.s4 839922192
        %v353 = vunpack.c.0.s8 %v352
        %v354 = vlaneseq
        %v355 = vshrl.u32 %v354, 7
        %v356 = vsub.s32 %v353, %v355
        %v357 = vrot.slane %v350, %v356
        %v359 = vmul.f32 %v250, %v357
        %v360 = vmul.f32 %v251, %v357
        %361 = vset.pattern.permute.xlu0 3
        %362 = vperm.xlu0 %361, %v243
        %v363 = vpop.permute.xlu0 %362
        %v365 = vunpack.c.l.s4 839922192
        %v366 = vunpack.c.0.s8 %v365
        %v367 = vlaneseq
        %v368 = vshrl.u32 %v367, 7
        %v369 = vsub.s32 %v366, %v368
        %v370 = vrot.slane %v363, %v369
        %v372 = vmul.f32 %v250, %v370
        %v373 = vmul.f32 %v251, %v370
        %376 = vrot.lane.b32.xlu0 %v372, 112
        %v377 = vpop.permute.xlu0 %376
        %378 = vrot.lane.b32.xlu0 %v373, 112
        %v379 = vpop.permute.xlu0 %378
        %v380 = vrot.slane %v377, 4
        %v381 = vrot.slane %v379, 4
        %v382 = vsel %vm278, %v380, %v381
        %v383 = vsel %vm294, %v377, %v382
        %v386 = vadd.f32 %v359, %v383
        %v387 = vadd.f32 %v360, %v379
        %388 = vset.pattern.permute.xlu0 6
        %389 = vperm.xlu0 %388, %v243
        %v390 = vpop.permute.xlu0 %389
        %391 = vrot.lane.b32.xlu0 %v250, 113
        %v392 = vpop.permute.xlu0 %391
        %393 = vrot.lane.b32.xlu0 %v251, 113
        %v394 = vpop.permute.xlu0 %393
        %v395 = vrot.slane %v392, 4
        %v396 = vrot.slane %v394, 4
        %v397 = vsel %vm278, %v395, %v396
        %vm398 = vcmask 924672
        %v399 = vsel %vm398, %v397, %v394
        %v402 = vunpack.c.l.s4 839922192
        %v403 = vunpack.c.0.s8 %v402
        %v404 = vlaneseq
        %v405 = vshrl.u32 %v404, 7
        %v406 = vsub.s32 %v403, %v405
        %v407 = vrot.slane %v390, %v406
        %v409 = vmul.f32 %v399, %v407
        %411 = vrot.lane.b32.xlu0 %v409, 111
        %v412 = vpop.permute.xlu0 %411
        %v413 = vrot.slane %v412, 4
        %vm414 = vcmask 908288
        %v415 = vsel %vm414, %v413, %v412
        %v418 = vadd.f32 %v386, %v415
        %v419 = vadd.f32 %v387, %v413
        %v422 = vcombine.high %v418, %v418
        %423 = vrot.lane.b32.xlu0 %v418, 17
        %v424 = vpop.permute.xlu0 %423
        %425 = vrot.lane.b32.xlu0 %v422, 17
        %v426 = vpop.permute.xlu0 %425
        %427 = vrot.lane.b32.xlu0 %v419, 17
        %v428 = vpop.permute.xlu0 %427
        %vm429 = vcmask 138240
        %v430 = vsel %vm429, %v424, %v426
        %v431 = vsel %vm429, %v426, %v428
        %v434 = vsel %vm346, %v430, 0.0
        %v435 = vsel %vm347, %v431, 0.0
        %v436 = vadd.f32 %v344, %v434
        %v437 = vadd.f32 %v345, %v435
        %vm438 = vcmp.ne.s32.totalorder %v255, 15
        %vm439 = vcmp.ne.s32.totalorder %v256, 15
        %440 = vset.pattern.permute.xlu0 2
        %441 = vperm.xlu0 %440, %v243
        %v442 = vpop.permute.xlu0 %441
        %v444 = vunpack.c.l.s4 839922192
        %v445 = vunpack.c.0.s8 %v444
        %v446 = vlaneseq
        %v447 = vshrl.u32 %v446, 7
        %v448 = vsub.s32 %v445, %v447
        %v449 = vrot.slane %v442, %v448
        %v451 = vmul.f32 %v250, %v449
        %v452 = vmul.f32 %v251, %v449
        %453 = vset.pattern.permute.xlu0 5
        %454 = vperm.xlu0 %453, %v243
        %v455 = vpop.permute.xlu0 %454
        %456 = vrot.lane.b32.xlu0 %v250, 127
        %v457 = vpop.permute.xlu0 %456
        %458 = vrot.lane.b32.xlu0 %v251, 127
        %v459 = vpop.permute.xlu0 %458
        %v460 = vrot.slane %v457, 4
        %v461 = vrot.slane %v459, 4
        %v462 = vsel %vm278, %v460, %v461
        %vm463 = vcmask 1039360
        %v464 = vsel %vm463, %v462, %v459
        %v467 = vunpack.c.l.s4 839922192
        %v468 = vunpack.c.0.s8 %v467
        %v469 = vlaneseq
        %v470 = vshrl.u32 %v469, 7
        %v471 = vsub.s32 %v468, %v470
        %v472 = vrot.slane %v455, %v471
        %v474 = vmul.f32 %v464, %v472
        %476 = vrot.lane.b32.xlu0 %v474, 113
        %v477 = vpop.permute.xlu0 %476
        %v478 = vrot.slane %v477, 4
        %v479 = vsel %vm398, %v478, %v477
        %v482 = vadd.f32 %v451, %v479
        %v483 = vadd.f32 %v452, %v478
        %484 = vset.pattern.permute.xlu0 8
        %485 = vperm.xlu0 %484, %v243
        %v486 = vpop.permute.xlu0 %485
        %487 = vrot.lane.b32.xlu0 %v250, 111
        %v488 = vpop.permute.xlu0 %487
        %489 = vrot.lane.b32.xlu0 %v251, 111
        %v490 = vpop.permute.xlu0 %489
        %v491 = vrot.slane %v488, 4
        %v492 = vrot.slane %v490, 4
        %v493 = vsel %vm278, %v491, %v492
        %v494 = vsel %vm414, %v493, %v490
        %v497 = vunpack.c.l.s4 839922192
        %v498 = vunpack.c.0.s8 %v497
        %v499 = vlaneseq
        %v500 = vshrl.u32 %v499, 7
        %v501 = vsub.s32 %v498, %v500
        %v502 = vrot.slane %v486, %v501
        %v504 = vmul.f32 %v494, %v502
        %506 = vrot.lane.b32.xlu0 %v504, 113
        %v507 = vpop.permute.xlu0 %506
        %v508 = vrot.slane %v507, 4
        %v509 = vsel %vm398, %v508, %v507
        %v512 = vadd.f32 %v482, %v509
        %v513 = vadd.f32 %v483, %v508
        %v516 = vcombine.high %v512, %v512
        %517 = vrot.lane.b32.xlu0 %v512, 15
        %v518 = vpop.permute.xlu0 %517
        %519 = vrot.lane.b32.xlu0 %v516, 15
        %v520 = vpop.permute.xlu0 %519
        %521 = vrot.lane.b32.xlu0 %v513, 15
        %v522 = vpop.permute.xlu0 %521
        %vm523 = vcmask 121856
        %v524 = vsel %vm523, %v518, %v520
        %v525 = vsel %vm523, %v520, %v522
        %v528 = vsel %vm438, %v524, 0.0
        %v529 = vsel %vm439, %v525, 0.0
        %v530 = vadd.f32 %v436, %v528
        %v531 = vadd.f32 %v437, %v529
        %v534 = vcombine.low %v530, %v531
        %536 = vst [vmem:[%s230] sm:$0xff] %v534
        %s537 = sand.u32 %s122, 1
        %s538 = scalar_lea.sflag [#allocation5], %s537
        %s539 = sand.u32 %s122, 1
        %s540 = smul.addr %s539, 8
        %s541 = scalar_lea.vmem [#allocation6], %s540
        // Predicated region
        $region37: #{tpu_custom_call.1} parent=31 // pred_check
          %p542 = pneg %p132
        $region38: #{tpu_custom_call.1} parent=31 // pred_check_branch
          %544 = sbr.rel (%p542) target = $region40
        $region39: #{tpu_custom_call.1} parent=31 // pred_region
          %s546 = ssub.s32 128, 128
          %547 = vsyncadd %s538, %s546
          %s548 = smul.addr %s24, 2
          %s549 = smul.addr %s25, 2
          %s550 = sadd.s32 %s548, %s549
          %s551 = smul.addr %s550, 64
          %s552 = scalar_lea.hbm %s3, %s551
          %s554 = sshll.u32 %s541, 4
          %s555 = int_to_ptr.vmem [resolvable:$true] %s554
          %557 = dma.vmem_to_hbm [thread:$0]  %s555, 128, %s552, %s538
        $region40: #{tpu_custom_call.1} parent=31 // pred_fallthru
          _
      $region32: #{tpu_custom_call.1} parent=5 // pred_fallthru
        _
      %p558 = scmp.le.s32.totalorder 2, %s15
      // Predicated region
      $region41: #{tpu_custom_call.1} parent=5 // pred_check
        %p559 = pneg %p558
      $region42: #{tpu_custom_call.1} parent=5 // pred_check_branch
        %561 = sbr.rel (%p559) target = $region44
      $region43: #{tpu_custom_call.1} parent=5 // pred_region
        %s562 = ssub.s32 %s15, 2
        // Predicated region
        $region45: #{tpu_custom_call.1} parent=43 // pred_check
          %p563 = pneg %p138
        $region46: #{tpu_custom_call.1} parent=43 // pred_check_branch
          %565 = sbr.rel (%p563) target = $region48
        $region47: #{tpu_custom_call.1} parent=43 // pred_region
          %s566 = sand.u32 %s123, 1
          %s567 = scalar_lea.sflag [#allocation5], %s566
          %s568 = sand.u32 %s123, 1
          %s569 = smul.addr %s568, 8
          %s570 = scalar_lea.vmem [#allocation6], %s569
          %571 = dma.done %s567, 128
        $region48: #{tpu_custom_call.1} parent=43 // pred_fallthru
          _
      $region44: #{tpu_custom_call.1} parent=5 // pred_fallthru
        _
    $region6: #{tpu_custom_call.1} parent=1 // loop_footer
      %s19 = sadd.s32 1, %s15
    $region7: #{tpu_custom_call.1} parent=1 // loop_footer_branch
      %14 = sbr.rel target = $region3
    $region8: #{tpu_custom_call.1} parent=1 // loop_exit
      _
    %572 = vsyncpa [#allocation4], 1
    %s573 = scalar_lea.sflag [#allocation4], 1
    %574 = vsyncpa %s573, 1
    %575 = vsyncpa [#allocation5], 1
    %s576 = scalar_lea.sflag [#allocation5], 1
    %577 = vsyncpa %s576, 1

</llo_original>
